<compile_context>
chip_gen: v7x
topology: tpu7x:2x2x1
jax: 0.10.0
libtpu: 0.0.40
codegen_flags: <defaults>
</compile_context>

<pallas_src>
import functools
import math

import jax
import jax.numpy as jnp
from jax.experimental import pallas as pl
from jax.experimental.pallas import tpu as pltpu


def _upsample_kernel(x_ref, w_ref, b_ref, o_ref, *, Wr, KH, KW, sH, sW, ct,
                     use_mxu):
    # x_ref: (1, Cin, L)           flat input, rows padded to pitch Wr, then L
    # w_ref: (1, KH*KW*ct, Cin)    rows ordered (tap kk, cout-within-tile)
    # b_ref: (1, ct, 1)            bias slice for this cout tile (f32)
    # o_ref: (1, 1, n_par, ct, L)  per-stride-parity flat canvases (pitch Wr)
    x = x_ref[0]                                   # (Cin, L)
    w = w_ref[0]                                   # (KH*KW*ct, Cin)
    L = o_ref.shape[-1]

    if use_mxu:
        # One MXU matmul: contract Cin for every (tap, cout) row at once.
        p_all = jnp.dot(w, x, preferred_element_type=jnp.float32)
    else:
        # Skinny-Cin path: exact-f32 broadcast-FMA on the VPU.
        cin = w.shape[1]
        p_all = w[:, 0:1].astype(jnp.float32) * x[0:1, :].astype(jnp.float32)
        for c in range(1, cin):
            p_all = p_all + (w[:, c:c + 1].astype(jnp.float32)
                             * x[c:c + 1, :].astype(jnp.float32))
    # p_all: (KH*KW*ct, L), f32; zero in the lane-padded tail (x is zero there)

    bias = b_ref[0].astype(jnp.float32)            # (ct, 1) -> lane broadcast

    # Fold / col2im: group taps by output parity (oh % sH, ow % sW), place
    # each tap at its lane offset with an XLU roll, sum in registers, and do
    # a single aligned full-L store per parity.
    for pi in range(sH):
        for pj in range(sW):
            acc = None
            for ki in range(pi, KH, sH):
                for kj in range(pj, KW, sW):
                    kk = ki * KW + kj
                    shift = (ki // sH) * Wr + (kj // sW)
                    tap = p_all[kk * ct:(kk + 1) * ct, :]      # (ct, L)
                    if shift:
                        # Circular roll is safe: tap is zero in [span, L) and
                        # L >= span + max_shift, so nothing real wraps around.
                        tap = pltpu.roll(tap, shift=shift, axis=1)
                    acc = tap if acc is None else acc + tap
            if acc is None:                         # parity with no taps
                acc = jnp.zeros((ct, L), jnp.float32)
            o_ref[0, 0, pi * sW + pj, :, :] = (acc + bias).astype(o_ref.dtype)


def upsampling_forward(x, weight, bias, stride, padding, *, cout_tile=None,
                       mxu_min_cin=32):
    """Transposed-conv forward matching Upsampling.forward (NCHW)."""
    if isinstance(stride, int):
        stride = (stride, stride)
    if isinstance(padding, int):
        padding = (padding, padding)
    B, Cin, H, W = x.shape
    Cin_w, Cout, KH, KW = weight.shape
    assert Cin == Cin_w
    sH, sW = stride
    pH, pW = padding
    Hout = (H - 1) * sH - 2 * pH + KH
    Wout = (W - 1) * sW - 2 * pW + KW
    n_kk = KH * KW
    n_par = sH * sW
    max_di = (KH - 1) // sH
    max_dj = (KW - 1) // sW
    nH = H + max_di                            # per-parity canvas rows
    Wr = W + max_dj                            # per-parity canvas row pitch
    L = -(-(nH * Wr + max_dj) // 128) * 128    # lane-dense flat canvas length

    ct = Cout if cout_tile is None else cout_tile
    assert Cout % ct == 0
    n_ct = Cout // ct

    use_mxu = Cin >= mxu_min_cin
    cdt = jnp.bfloat16 if use_mxu else jnp.float32
    itemsize = 2 if use_mxu else 4

    # Pad input rows to pitch Wr, flatten pixels, pad pixels to lane length L.
    x_p = jnp.pad(x, ((0, 0), (0, 0), (0, 0), (0, Wr - W)))
    x_p = x_p.reshape(B, Cin, H * Wr)
    x_p = jnp.pad(x_p, ((0, 0), (0, 0), (0, L - H * Wr))).astype(cdt)

    # Weight rows laid out as (cout-tile, (tap kk, cout-within-tile), Cin).
    w_t = jnp.transpose(weight, (2, 3, 1, 0)).reshape(n_kk, Cout, Cin)
    w_arr = (w_t.reshape(n_kk, n_ct, ct, Cin)
                .transpose(1, 0, 2, 3)
                .reshape(n_ct, n_kk * ct, Cin)
                .astype(cdt))
    b_arr = bias.reshape(n_ct, ct, 1).astype(jnp.float32)

    kernel = functools.partial(_upsample_kernel, Wr=Wr, KH=KH, KW=KW,
                               sH=sH, sW=sW, ct=ct, use_mxu=use_mxu)

    # Accurate VMEM budget: double-buffered blocks + the p_all intermediate
    # + a few (ct, L) parity accumulators.  Capped well under v7x's 64 MiB.
    x_blk = Cin * L * itemsize
    w_blk = n_kk * ct * Cin * itemsize
    o_blk = n_par * ct * L * 4
    need = (2 * (x_blk + w_blk + ct * 4 + o_blk)
            + n_kk * ct * L * 4 + 4 * ct * L * 4)
    vmem_limit = int(min(32 << 20, max(16 << 20, 2 * need)))

    cost = pl.CostEstimate(
        flops=2 * B * Cout * Cin * n_kk * H * W,
        transcendentals=0,
        bytes_accessed=(B * x_blk + n_ct * w_blk + Cout * 4
                        + B * n_ct * n_par * ct * L * 4),
    )

    out_k = pl.pallas_call(
        kernel,
        out_shape=jax.ShapeDtypeStruct((B, n_ct, n_par, ct, L), jnp.float32),
        grid=(B, n_ct),
        in_specs=[
            pl.BlockSpec((1, Cin, L), lambda b, j: (b, 0, 0)),
            pl.BlockSpec((1, n_kk * ct, Cin), lambda b, j: (j, 0, 0)),
            pl.BlockSpec((1, ct, 1), lambda b, j: (j, 0, 0)),
        ],
        out_specs=pl.BlockSpec((1, 1, n_par, ct, L),
                               lambda b, j: (b, j, 0, 0, 0)),
        compiler_params=pltpu.CompilerParams(
            dimension_semantics=("parallel", "parallel"),
            vmem_limit_bytes=vmem_limit,
        ),
        cost_estimate=cost,
    )(x_p, w_arr, b_arr)

    # Layout-only epilogue in XLA: un-flatten the canvases, interleave the
    # stride parities (pixel-shuffle), crop the transposed-conv padding.
    # Bias was already added in the kernel.
    sub = out_k[..., : nH * Wr].reshape(B, n_ct, sH, sW, ct, nH, Wr)
    full = sub.transpose(0, 1, 4, 5, 2, 6, 3).reshape(B, Cout, nH * sH, Wr * sW)
    return full[:, :, pH:pH + Hout, pW:pW + Wout]


def _reference(x, weight, bias, stride, padding):
    """Pure-JAX f32 reference (scatter-add fold, no reduced-precision dots)."""
    B, Cin, H, W = x.shape
    _, Cout, KH, KW = weight.shape
    sH, sW = stride
    pH, pW = padding
    Hout = (H - 1) * sH - 2 * pH + KH
    Wout = (W - 1) * sW - 2 * pW + KW
    out = jnp.zeros((B, Cout, (H - 1) * sH + KH, (W - 1) * sW + KW), jnp.float32)
    for ki in range(KH):
        for kj in range(KW):
            contrib = (x[:, :, None, :, :]
                       * weight[None, :, :, ki, kj, None, None]).sum(axis=1)
            out = out.at[:, :, ki:ki + sH * (H - 1) + 1:sH,
                               kj:kj + sW * (W - 1) + 1:sW].add(contrib)
    out = out[:, :, pH:pH + Hout, pW:pW + Wout]
    return out + bias[None, :, None, None]


if __name__ == "__main__":
    # Module hyper-parameters (small, consistent with the PyTorch __init__).
    Cin, Cout = 4, 4
    KH = KW = 3
    stride = (2, 2)
    padding = (1, 1)
    B, H, W = 2, 16, 16

    # Deterministic parameter init mirroring uniform_(-k_sqrt, k_sqrt).
    k_sqrt = math.sqrt(1.0 / (Cin * KH * KW))
    key = jax.random.PRNGKey(0)
    kx, kw, kb = jax.random.split(key, 3)
    weight = jax.random.uniform(kw, (Cin, Cout, KH, KW), jnp.float32, -k_sqrt, k_sqrt)
    bias = jax.random.uniform(kb, (Cout,), jnp.float32, -k_sqrt, k_sqrt)
    x = jax.random.normal(kx, (B, Cin, H, W), jnp.float32)

    out = upsampling_forward(x, weight, bias, stride, padding)
    out = jax.block_until_ready(out)

    # Cin=4 < 32 -> kernel uses the exact-f32 VPU path, so compare against a
    # full-f32 reference with a tight tolerance.
    ref = _reference(x, weight, bias, stride, padding)

    Hout = (H - 1) * stride[0] - 2 * padding[0] + KH
    Wout = (W - 1) * stride[1] - 2 * padding[1] + KW
    assert out.shape == ref.shape == (B, Cout, Hout, Wout)
    err = float(jnp.max(jnp.abs(out - ref)))
    assert err < 1e-4, err
    print("KERNEL_OK")
</pallas_src>

<mosaic_0001>
module attributes {stable_mosaic.version = 11 : i64} {
  func.func @_upsample_kernel(%arg0: i32, %arg1: i32, %arg2: memref<1x4x384xf32, #tpu.memory_space<vmem>>, %arg3: memref<1x36x4xf32, #tpu.memory_space<vmem>>, %arg4: memref<1x4x1xf32, #tpu.memory_space<vmem>>, %arg5: memref<1x1x4x4x384xf32, #tpu.memory_space<vmem>>) attributes {dimension_semantics = [#tpu.dimension_semantics<parallel>, #tpu.dimension_semantics<parallel>], iteration_bounds = array<i64: 2, 1>, scalar_prefetch = 0 : i64, scratch_operands = 0 : i64, tpu.core_type = #tpu.core_type<tc>, window_params = [{transform_indices = @transform_0, window_bounds = array<i64: 1, 4, 384>}, {transform_indices = @transform_1, window_bounds = array<i64: 1, 36, 4>}, {transform_indices = @transform_2, window_bounds = array<i64: 1, 4, 1>}, {transform_indices = @transform_3, window_bounds = array<i64: 1, 1, 4, 4, 384>}]} {
    %c0 = arith.constant 0 : index
    %c0_0 = arith.constant 0 : index
    %c0_1 = arith.constant 0 : index
    %0 = vector.load %arg2[%c0, %c0_0, %c0_1] : memref<1x4x384xf32, #tpu.memory_space<vmem>>, vector<1x4x384xf32>
    %1 = vector.shape_cast %0 : vector<1x4x384xf32> to vector<4x384xf32>
    %c0_2 = arith.constant 0 : index
    %c0_3 = arith.constant 0 : index
    %c0_4 = arith.constant 0 : index
    %2 = vector.load %arg3[%c0_2, %c0_3, %c0_4] : memref<1x36x4xf32, #tpu.memory_space<vmem>>, vector<1x36x4xf32>
    %3 = vector.shape_cast %2 : vector<1x36x4xf32> to vector<36x4xf32>
    %4 = vector.extract_strided_slice %3 {offsets = [0, 0], sizes = [36, 1], strides = [1, 1]} : vector<36x4xf32> to vector<36x1xf32>
    %5 = vector.extract_strided_slice %1 {offsets = [0, 0], sizes = [1, 384], strides = [1, 1]} : vector<4x384xf32> to vector<1x384xf32>
    %6 = vector.broadcast %4 : vector<36x1xf32> to vector<36x384xf32>
    %7 = vector.broadcast %5 : vector<1x384xf32> to vector<36x384xf32>
    %8 = arith.mulf %6, %7 : vector<36x384xf32>
    %9 = vector.extract_strided_slice %3 {offsets = [0, 1], sizes = [36, 1], strides = [1, 1]} : vector<36x4xf32> to vector<36x1xf32>
    %10 = vector.extract_strided_slice %1 {offsets = [1, 0], sizes = [1, 384], strides = [1, 1]} : vector<4x384xf32> to vector<1x384xf32>
    %11 = vector.broadcast %9 : vector<36x1xf32> to vector<36x384xf32>
    %12 = vector.broadcast %10 : vector<1x384xf32> to vector<36x384xf32>
    %13 = arith.mulf %11, %12 : vector<36x384xf32>
    %14 = arith.addf %8, %13 : vector<36x384xf32>
    %15 = vector.extract_strided_slice %3 {offsets = [0, 2], sizes = [36, 1], strides = [1, 1]} : vector<36x4xf32> to vector<36x1xf32>
    %16 = vector.extract_strided_slice %1 {offsets = [2, 0], sizes = [1, 384], strides = [1, 1]} : vector<4x384xf32> to vector<1x384xf32>
    %17 = vector.broadcast %15 : vector<36x1xf32> to vector<36x384xf32>
    %18 = vector.broadcast %16 : vector<1x384xf32> to vector<36x384xf32>
    %19 = arith.mulf %17, %18 : vector<36x384xf32>
    %20 = arith.addf %14, %19 : vector<36x384xf32>
    %21 = vector.extract_strided_slice %3 {offsets = [0, 3], sizes = [36, 1], strides = [1, 1]} : vector<36x4xf32> to vector<36x1xf32>
    %22 = vector.extract_strided_slice %1 {offsets = [3, 0], sizes = [1, 384], strides = [1, 1]} : vector<4x384xf32> to vector<1x384xf32>
    %23 = vector.broadcast %21 : vector<36x1xf32> to vector<36x384xf32>
    %24 = vector.broadcast %22 : vector<1x384xf32> to vector<36x384xf32>
    %25 = arith.mulf %23, %24 : vector<36x384xf32>
    %26 = arith.addf %20, %25 : vector<36x384xf32>
    %c0_5 = arith.constant 0 : index
    %c0_6 = arith.constant 0 : index
    %c0_7 = arith.constant 0 : index
    %27 = vector.load %arg4[%c0_5, %c0_6, %c0_7] : memref<1x4x1xf32, #tpu.memory_space<vmem>>, vector<1x4x1xf32>
    %28 = vector.shape_cast %27 : vector<1x4x1xf32> to vector<4x1xf32>
    %29 = vector.extract_strided_slice %26 {offsets = [0, 0], sizes = [4, 384], strides = [1, 1]} : vector<36x384xf32> to vector<4x384xf32>
    %30 = vector.extract_strided_slice %26 {offsets = [8, 0], sizes = [4, 384], strides = [1, 1]} : vector<36x384xf32> to vector<4x384xf32>
    %c1_i32 = arith.constant 1 : i32
    %31 = tpu.dynamic_rotate %30 by %c1_i32 dim 1 : vector<4x384xf32>, i32 -> vector<4x384xf32>
    %32 = arith.addf %29, %31 : vector<4x384xf32>
    %33 = vector.extract_strided_slice %26 {offsets = [24, 0], sizes = [4, 384], strides = [1, 1]} : vector<36x384xf32> to vector<4x384xf32>
    %c17_i32 = arith.constant 17 : i32
    %34 = tpu.dynamic_rotate %33 by %c17_i32 dim 1 : vector<4x384xf32>, i32 -> vector<4x384xf32>
    %35 = arith.addf %32, %34 : vector<4x384xf32>
    %36 = vector.extract_strided_slice %26 {offsets = [32, 0], sizes = [4, 384], strides = [1, 1]} : vector<36x384xf32> to vector<4x384xf32>
    %c18_i32 = arith.constant 18 : i32
    %37 = tpu.dynamic_rotate %36 by %c18_i32 dim 1 : vector<4x384xf32>, i32 -> vector<4x384xf32>
    %38 = arith.addf %35, %37 : vector<4x384xf32>
    %39 = vector.broadcast %28 : vector<4x1xf32> to vector<4x384xf32>
    %40 = arith.addf %38, %39 : vector<4x384xf32>
    %c0_8 = arith.constant 0 : index
    %c0_9 = arith.constant 0 : index
    %c0_10 = arith.constant 0 : index
    %c0_11 = arith.constant 0 : index
    %c0_12 = arith.constant 0 : index
    %41 = vector.load %arg5[%c0_8, %c0_9, %c0_10, %c0_11, %c0_12] : memref<1x1x4x4x384xf32, #tpu.memory_space<vmem>>, vector<1x1x1x4x384xf32>
    %42 = vector.shape_cast %41 : vector<1x1x1x4x384xf32> to vector<4x384xf32>
    %43 = vector.shape_cast %40 : vector<4x384xf32> to vector<1x1x1x4x384xf32>
    tpu.vector_store %arg5[%c0_8, %c0_9, %c0_10, %c0_11, %c0_12], %43 {strides = array<i32>} : memref<1x1x4x4x384xf32, #tpu.memory_space<vmem>>, vector<1x1x1x4x384xf32>,
    %44 = vector.extract_strided_slice %26 {offsets = [4, 0], sizes = [4, 384], strides = [1, 1]} : vector<36x384xf32> to vector<4x384xf32>
    %45 = vector.extract_strided_slice %26 {offsets = [28, 0], sizes = [4, 384], strides = [1, 1]} : vector<36x384xf32> to vector<4x384xf32>
    %c17_i32_13 = arith.constant 17 : i32
    %46 = tpu.dynamic_rotate %45 by %c17_i32_13 dim 1 : vector<4x384xf32>, i32 -> vector<4x384xf32>
    %47 = arith.addf %44, %46 : vector<4x384xf32>
    %48 = vector.broadcast %28 : vector<4x1xf32> to vector<4x384xf32>
    %49 = arith.addf %47, %48 : vector<4x384xf32>
    %c0_14 = arith.constant 0 : index
    %c0_15 = arith.constant 0 : index
    %c1 = arith.constant 1 : index
    %c0_16 = arith.constant 0 : index
    %c0_17 = arith.constant 0 : index
    %50 = vector.load %arg5[%c0_14, %c0_15, %c1, %c0_16, %c0_17] : memref<1x1x4x4x384xf32, #tpu.memory_space<vmem>>, vector<1x1x1x4x384xf32>
    %51 = vector.shape_cast %50 : vector<1x1x1x4x384xf32> to vector<4x384xf32>
    %52 = vector.shape_cast %49 : vector<4x384xf32> to vector<1x1x1x4x384xf32>
    tpu.vector_store %arg5[%c0_14, %c0_15, %c1, %c0_16, %c0_17], %52 {strides = array<i32>} : memref<1x1x4x4x384xf32, #tpu.memory_space<vmem>>, vector<1x1x1x4x384xf32>,
    %53 = vector.extract_strided_slice %26 {offsets = [12, 0], sizes = [4, 384], strides = [1, 1]} : vector<36x384xf32> to vector<4x384xf32>
    %54 = vector.extract_strided_slice %26 {offsets = [20, 0], sizes = [4, 384], strides = [1, 1]} : vector<36x384xf32> to vector<4x384xf32>
    %c1_i32_18 = arith.constant 1 : i32
    %55 = tpu.dynamic_rotate %54 by %c1_i32_18 dim 1 : vector<4x384xf32>, i32 -> vector<4x384xf32>
    %56 = arith.addf %53, %55 : vector<4x384xf32>
    %57 = vector.broadcast %28 : vector<4x1xf32> to vector<4x384xf32>
    %58 = arith.addf %56, %57 : vector<4x384xf32>
    %c0_19 = arith.constant 0 : index
    %c0_20 = arith.constant 0 : index
    %c2 = arith.constant 2 : index
    %c0_21 = arith.constant 0 : index
    %c0_22 = arith.constant 0 : index
    %59 = vector.load %arg5[%c0_19, %c0_20, %c2, %c0_21, %c0_22] : memref<1x1x4x4x384xf32, #tpu.memory_space<vmem>>, vector<1x1x1x4x384xf32>
    %60 = vector.shape_cast %59 : vector<1x1x1x4x384xf32> to vector<4x384xf32>
    %61 = vector.shape_cast %58 : vector<4x384xf32> to vector<1x1x1x4x384xf32>
    tpu.vector_store %arg5[%c0_19, %c0_20, %c2, %c0_21, %c0_22], %61 {strides = array<i32>} : memref<1x1x4x4x384xf32, #tpu.memory_space<vmem>>, vector<1x1x1x4x384xf32>,
    %62 = vector.extract_strided_slice %26 {offsets = [16, 0], sizes = [4, 384], strides = [1, 1]} : vector<36x384xf32> to vector<4x384xf32>
    %63 = vector.broadcast %28 : vector<4x1xf32> to vector<4x384xf32>
    %64 = arith.addf %62, %63 : vector<4x384xf32>
    %c0_23 = arith.constant 0 : index
    %c0_24 = arith.constant 0 : index
    %c3 = arith.constant 3 : index
    %c0_25 = arith.constant 0 : index
    %c0_26 = arith.constant 0 : index
    %65 = vector.load %arg5[%c0_23, %c0_24, %c3, %c0_25, %c0_26] : memref<1x1x4x4x384xf32, #tpu.memory_space<vmem>>, vector<1x1x1x4x384xf32>
    %66 = vector.shape_cast %65 : vector<1x1x1x4x384xf32> to vector<4x384xf32>
    %67 = vector.shape_cast %64 : vector<4x384xf32> to vector<1x1x1x4x384xf32>
    tpu.vector_store %arg5[%c0_23, %c0_24, %c3, %c0_25, %c0_26], %67 {strides = array<i32>} : memref<1x1x4x4x384xf32, #tpu.memory_space<vmem>>, vector<1x1x1x4x384xf32>,
    return
  }
  func.func @transform_0(%arg0: i32, %arg1: i32) -> (i32, i32, i32) {
    %c0_i32 = arith.constant 0 : i32
    %c0_i32_0 = arith.constant 0 : i32
    %c0_i32_1 = arith.constant 0 : i32
    return %arg0, %c0_i32, %c0_i32_0 : i32, i32, i32
  }
  func.func @transform_1(%arg0: i32, %arg1: i32) -> (i32, i32, i32) {
    %c0_i32 = arith.constant 0 : i32
    %c0_i32_0 = arith.constant 0 : i32
    %c0_i32_1 = arith.constant 0 : i32
    return %arg1, %c0_i32, %c0_i32_0 : i32, i32, i32
  }
  func.func @transform_2(%arg0: i32, %arg1: i32) -> (i32, i32, i32) {
    %c0_i32 = arith.constant 0 : i32
    %c0_i32_0 = arith.constant 0 : i32
    %c0_i32_1 = arith.constant 0 : i32
    return %arg1, %c0_i32, %c0_i32_0 : i32, i32, i32
  }
  func.func @transform_3(%arg0: i32, %arg1: i32) -> (i32, i32, i32, i32, i32) {
    %c0_i32 = arith.constant 0 : i32
    %c0_i32_0 = arith.constant 0 : i32
    %c0_i32_1 = arith.constant 0 : i32
    %c0_i32_2 = arith.constant 0 : i32
    return %arg0, %arg1, %c0_i32, %c0_i32_0, %c0_i32_1 : i32, i32, i32, i32, i32
  }
}

</mosaic_0001>

<llo_original>
// kernel: tpu_custom_call.1
$region0: #{tpu_custom_call.1}
  #allocation0 [shape = 'u32[]', space=smem, size = 0x4, offset = 0x4, fixed_abs, tag = 'smem constant byte address 0x4 - core index']
  #allocation1 [shape = 'u32[144,128]{1,0:T(1,128)}', space=vmem, size = 0x12000, scoped, tag = 'internal scratch']
  %s0 = inlined_call_operand.vmem [shape: f32[2,4,384], index: 0, kind: input, shape index: {}]
  %s1 = inlined_call_operand.vmem [shape: f32[1,36,4], index: 1, kind: input, shape index: {}]
  %s2 = inlined_call_operand.vmem [shape: f32[1,4,1], index: 2, kind: input, shape index: {}]
  %s3 = inlined_call_operand.hbm [shape: f32[2,1,4,4,384], index: 3, kind: output, shape index: {}]
  %s4 = sld [smem:[#allocation0]]
  $region45: #{tpu_custom_call.1} parent=0
    _
  %s6 = ssub.s32 1, %s4
  %s7 = scalar_select 0, %s6, %s4
  $region1: #{tpu_custom_call.1} parent=0
    #allocation2 [shape = 'u8[49152]{0}', space=vmem, size = 0xc000, scoped, tag = 'output window, operand 0']
    #allocation3 [shape = 's32[2]{0}', space=sflag, size = 0x8, scoped, tag = 'scoped memory for tpu_custom_call.1']
    %8 = vsyncpa [#allocation3], 0
    %s9 = scalar_lea.sflag [#allocation3], 1
    %10 = vsyncpa %s9, 0
    loop: start=0, step=1, limit=4
    $region2: #{tpu_custom_call.1} parent=1 // loop_pre_header
      _
    $region3: #{tpu_custom_call.1} parent=1 // loop_header
      %s12 = sphi 0, %s16
      %p13 = scmp.ge.s32.totalorder %s12, 4
      %s19 = sphi 0, %s31
      %s20 = sphi 0, %s27
      %s21 = sphi 0, %s19
      %s22 = sphi 0, %s20
      %s23 = sphi 0, %s21
      %s24 = sphi 0, %s22
      %s34 = sphi 0, %s36
      %s37 = sphi 0, %s34
      %s38 = sphi 0, %s37
      %s54 = sphi 0, %s38
      %s60 = sphi 0, %s62
      %s63 = sphi 0, %s60
      %s64 = sphi 0, %s63
      %s80 = sphi 0, %s64
      %s86 = sphi 0, %s88
      %s89 = sphi 0, %s86
      %s90 = sphi 0, %s89
      %s106 = sphi 0, %s90
      %s114 = sphi 0, %s116
      %s117 = sphi 0, %s114
      %s118 = sphi 0, %s117
      %s134 = sphi 0, %s118
    $region4: #{tpu_custom_call.1} parent=1 // loop_header_branch
      %15 = sbr.rel (%p13) target = $region8
    $region5: #{tpu_custom_call.1} parent=1 // loop_body
      %s17 = ssub.s32 %s12, 1
      %s18 = ssub.s32 %s12, 2
      %s25 = sadd.s32 1, %s20
      %p26 = scmp.ge.s32.totalorder %s25, 1
      %s27 = scalar_select %p26, 0, %s25
      %s28 = sadd.s32 1, %s19
      %s29 = scalar_select %p26, %s28, %s19
      %p30 = scmp.ge.s32.totalorder %s29, 2
      %s31 = scalar_select %p30, 0, %s29
      %s32 = ssub.s32 %s19, %s31
      %p33 = scmp.eq.s32.totalorder %s32, 0
      %s35 = sadd.s32 %s34, 1
      %s36 = scalar_select %p33, %s34, %s35
      %p39 = pneg %p33
      %p40 = scmp.eq.s32.totalorder %s12, 1
      %p41 = por %p39, %p40
      %p42 = scmp.ne.s32.totalorder %s34, %s37
      %p43 = scmp.eq.s32.totalorder %s12, 0
      %p44 = por %p42, %p43
      %p45 = scmp.ne.s32.totalorder %s34, %s37
      %p46 = scmp.eq.s32.totalorder %s17, 1
      %p47 = por %p45, %p46
      %p48 = scmp.ne.s32.totalorder %s37, %s38
      %p49 = scmp.eq.s32.totalorder %s17, 0
      %p50 = por %p48, %p49
      %p51 = scmp.ne.s32.totalorder %s37, %s38
      %p52 = scmp.eq.s32.totalorder %s18, 1
      %p53 = por %p51, %p52
      %p55 = scmp.ne.s32.totalorder %s38, %s54
      %p56 = scmp.eq.s32.totalorder %s18, 0
      %p57 = por %p55, %p56
      %s58 = ssub.s32 %s20, %s27
      %p59 = scmp.eq.s32.totalorder %s58, 0
      %s61 = sadd.s32 %s60, 1
      %s62 = scalar_select %p59, %s60, %s61
      %p65 = pneg %p59
      %p66 = scmp.eq.s32.totalorder %s12, 1
      %p67 = por %p65, %p66
      %p68 = scmp.ne.s32.totalorder %s60, %s63
      %p69 = scmp.eq.s32.totalorder %s12, 0
      %p70 = por %p68, %p69
      %p71 = scmp.ne.s32.totalorder %s60, %s63
      %p72 = scmp.eq.s32.totalorder %s17, 1
      %p73 = por %p71, %p72
      %p74 = scmp.ne.s32.totalorder %s63, %s64
      %p75 = scmp.eq.s32.totalorder %s17, 0
      %p76 = por %p74, %p75
      %p77 = scmp.ne.s32.totalorder %s63, %s64
      %p78 = scmp.eq.s32.totalorder %s18, 1
      %p79 = por %p77, %p78
      %p81 = scmp.ne.s32.totalorder %s64, %s80
      %p82 = scmp.eq.s32.totalorder %s18, 0
      %p83 = por %p81, %p82
      %s84 = ssub.s32 %s20, %s27
      %p85 = scmp.eq.s32.totalorder %s84, 0
      %s87 = sadd.s32 %s86, 1
      %s88 = scalar_select %p85, %s86, %s87
      %p91 = pneg %p85
      %p92 = scmp.eq.s32.totalorder %s12, 1
      %p93 = por %p91, %p92
      %p94 = scmp.ne.s32.totalorder %s86, %s89
      %p95 = scmp.eq.s32.totalorder %s12, 0
      %p96 = por %p94, %p95
      %p97 = scmp.ne.s32.totalorder %s86, %s89
      %p98 = scmp.eq.s32.totalorder %s17, 1
      %p99 = por %p97, %p98
      %p100 = scmp.ne.s32.totalorder %s89, %s90
      %p101 = scmp.eq.s32.totalorder %s17, 0
      %p102 = por %p100, %p101
      %p103 = scmp.ne.s32.totalorder %s89, %s90
      %p104 = scmp.eq.s32.totalorder %s18, 1
      %p105 = por %p103, %p104
      %p107 = scmp.ne.s32.totalorder %s90, %s106
      %p108 = scmp.eq.s32.totalorder %s18, 0
      %p109 = por %p107, %p108
      %s110 = ssub.s32 %s19, %s31
      %s111 = ssub.s32 %s20, %s27
      %s112 = sor.u32 %s110, %s111
      %p113 = scmp.eq.s32.totalorder %s112, 0
      %s115 = sadd.s32 %s114, 1
      %s116 = scalar_select %p113, %s114, %s115
      %p119 = pneg %p113
      %p120 = scmp.eq.s32.totalorder %s12, 1
      %p121 = por %p119, %p120
      %p122 = scmp.ne.s32.totalorder %s114, %s117
      %p123 = scmp.eq.s32.totalorder %s12, 0
      %p124 = por %p122, %p123
      %p125 = scmp.ne.s32.totalorder %s114, %s117
      %p126 = scmp.eq.s32.totalorder %s17, 1
      %p127 = por %p125, %p126
      %p128 = scmp.ne.s32.totalorder %s117, %s118
      %p129 = scmp.eq.s32.totalorder %s17, 0
      %p130 = por %p128, %p129
      %p131 = scmp.ne.s32.totalorder %s117, %s118
      %p132 = scmp.eq.s32.totalorder %s18, 1
      %p133 = por %p131, %p132
      %p135 = scmp.ne.s32.totalorder %s118, %s134
      %p136 = scmp.eq.s32.totalorder %s18, 0
      %p137 = por %p135, %p136
      %p138 = scmp.le.s32.totalorder 1, %s12
      %p139 = scmp.lt.s32.totalorder %s12, 3
      %p140 = pnand %p138, %p139
      %p141 = pneg %p140
      // Predicated region
      $region9: #{tpu_custom_call.1} parent=5 // pred_check
        _
      $region10: #{tpu_custom_call.1} parent=5 // pred_check_branch
        %143 = sbr.rel (%p140) target = $region12
      $region11: #{tpu_custom_call.1} parent=5 // pred_region
        %s144 = ssub.s32 %s12, 1
        // Predicated region
        $region13: #{tpu_custom_call.1} parent=11 // pred_check
          %p145 = pneg %p76
        $region14: #{tpu_custom_call.1} parent=11 // pred_check_branch
          %147 = sbr.rel (%p145) target = $region16
        $region15: #{tpu_custom_call.1} parent=11 // pred_region
          %p148 = scmp.lt.s32.totalorder %s22, 0
          %s149 = scalar_select %p148, %s22, 0
          %s150 = smul.addr %s149, 5
          %s151 = smul.addr %s150, 8
          %s152 = scalar_lea.vmem %s1, %s151
        $region16: #{tpu_custom_call.1} parent=11 // pred_fallthru
          _
        // Predicated region
        $region17: #{tpu_custom_call.1} parent=11 // pred_check
          %p153 = pneg %p102
        $region18: #{tpu_custom_call.1} parent=11 // pred_check_branch
          %155 = sbr.rel (%p153) target = $region20
        $region19: #{tpu_custom_call.1} parent=11 // pred_region
          %p156 = scmp.lt.s32.totalorder %s22, 0
          %s157 = scalar_select %p156, %s22, 0
          %s158 = smul.addr %s157, 4
          %s159 = scalar_lea.vmem %s2, %s158
        $region20: #{tpu_custom_call.1} parent=11 // pred_fallthru
          _
      $region12: #{tpu_custom_call.1} parent=5 // pred_fallthru
        _
      %p160 = scmp.lt.s32.totalorder %s12, 2
      // Predicated region
      $region21: #{tpu_custom_call.1} parent=5 // pred_check
        %p161 = pneg %p160
      $region22: #{tpu_custom_call.1} parent=5 // pred_check_branch
        %163 = sbr.rel (%p161) target = $region24
      $region23: #{tpu_custom_call.1} parent=5 // pred_region
        // Predicated region
        $region25: #{tpu_custom_call.1} parent=23 // pred_check
          %p164 = pneg %p44
        $region26: #{tpu_custom_call.1} parent=23 // pred_check_branch
          %166 = sbr.rel (%p164) target = $region28
        $region27: #{tpu_custom_call.1} parent=23 // pred_region
          %p167 = scmp.lt.s32.totalorder %s19, 1
          %s168 = scalar_select %p167, %s19, 1
          %s169 = smul.addr %s168, 3
          %s170 = smul.addr %s169, 4
          %s171 = scalar_lea.vmem %s0, %s170
        $region28: #{tpu_custom_call.1} parent=23 // pred_fallthru
          _
      $region24: #{tpu_custom_call.1} parent=5 // pred_fallthru
        _
      %p172 = scmp.le.s32.totalorder 1, %s12
      %p173 = scmp.lt.s32.totalorder %s12, 3
      %p174 = pnand %p172, %p173
      %p175 = pneg %p174
      // Predicated region
      $region29: #{tpu_custom_call.1} parent=5 // pred_check
        _
      $region30: #{tpu_custom_call.1} parent=5 // pred_check_branch
        %177 = sbr.rel (%p174) target = $region32
      $region31: #{tpu_custom_call.1} parent=5 // pred_region
        %s178 = ssub.s32 %s12, 1
        %p179 = scmp.lt.s32.totalorder %s21, 1
        %s180 = scalar_select %p179, %s21, 1
        %s181 = smul.addr %s180, 3
        %s182 = smul.addr %s181, 4
        %s183 = scalar_lea.vmem %s0, %s182
        %p184 = pneg %p50
        %p185 = pneg %p47
        %p186 = scmp.lt.s32.totalorder %s22, 0
        %s187 = scalar_select %p186, %s22, 0
        %s188 = smul.addr %s187, 5
        %s189 = smul.addr %s188, 8
        %s190 = scalar_lea.vmem %s1, %s189
        %p191 = pneg %p76
        %p192 = pneg %p73
        %p193 = scmp.lt.s32.totalorder %s22, 0
        %s194 = scalar_select %p193, %s22, 0
        %s195 = smul.addr %s194, 4
        %s196 = scalar_lea.vmem %s2, %s195
        %p197 = pneg %p102
        %p198 = pneg %p99
        %p199 = pneg %p130
        %p200 = pneg %p127
        %s201 = sand.u32 %s117, 1
        %s202 = scalar_lea.sflag [#allocation3], %s201
        %s203 = sand.u32 %s117, 1
        %s204 = smul.addr %s203, 48
        %s205 = scalar_lea.vmem [#allocation2], %s204
        %p206 = scmp.lt.s32.totalorder %s21, 1
        %s207 = scalar_select %p206, %s21, 1
        %s208 = smul.addr %s207, 3
        %s209 = smul.addr %s208, 4
        %s210 = scalar_lea.vmem %s0, %s209
        %p211 = scmp.lt.s32.totalorder %s22, 0
        %s212 = scalar_select %p211, %s22, 0
        %s213 = smul.addr %s212, 5
        %s214 = smul.addr %s213, 8
        %s215 = scalar_lea.vmem %s1, %s214
        %p216 = scmp.lt.s32.totalorder %s22, 0
        %s217 = scalar_select %p216, %s22, 0
        %s218 = smul.addr %s217, 4
        %s219 = scalar_lea.vmem %s2, %s218
        %v220 = vld [vmem:[%s210] sm:$0xff]
        %v221 = vld [vmem:[%s210 + $0x8] sm:$0xf]
        %v222 = vld [vmem:[%s215] sm:$0xff]
        %v223 = vld [vmem:[%s215 + $0x8] sm:$0xff]
        %v224 = vld [vmem:[%s215 + $0x10] sm:$0xff]
        %v225 = vld [vmem:[%s215 + $0x18] sm:$0xff]
        %v226 = vld [vmem:[%s215 + $0x20] sm:$0xf]
        %228 = vset.pattern.permute.xlu0 0
        %229 = vperm.xlu0 %228, %v222
        %v230 = vpop.permute.xlu0 %229
        %233 = vset.pattern.permute.xlu0 0
        %234 = vperm.xlu0 %233, %v223
        %v235 = vpop.permute.xlu0 %234
        %238 = vset.pattern.permute.xlu0 0
        %239 = vperm.xlu0 %238, %v224
        %v240 = vpop.permute.xlu0 %239
        %243 = vset.pattern.permute.xlu0 0
        %244 = vperm.xlu0 %243, %v225
        %v245 = vpop.permute.xlu0 %244
        %248 = vset.pattern.permute.xlu0 0
        %249 = vperm.xlu0 %248, %v226
        %v250 = vpop.permute.xlu0 %249
        %v254 = vlaneseq
        %v255 = vshrl.u32 %v254, 7
        %v256 = vsub.s32 0, %v255
        %v257 = vrot.slane %v220, %v256
        %v258 = vlaneseq
        %v259 = vshrl.u32 %v258, 7
        %v260 = vsub.s32 4, %v259
        %v261 = vrot.slane %v220, %v260
        %v262 = vlaneseq
        %v263 = vshrl.u32 %v262, 7
        %v264 = vsub.s32 0, %v263
        %v265 = vrot.slane %v221, %v264
        %v269 = vlaneseq
        %v270 = vshrl.u32 %v269, 7
        %v271 = vsub.s32 0, %v270
        %v272 = vrot.slane %v257, %v271
        %v273 = vlaneseq
        %v274 = vshrl.u32 %v273, 7
        %v275 = vsub.s32 0, %v274
        %v276 = vrot.slane %v261, %v275
        %v277 = vlaneseq
        %v278 = vshrl.u32 %v277, 7
        %v279 = vsub.s32 0, %v278
        %v280 = vrot.slane %v265, %v279
        %v281 = vmul.f32 %v230, %v272
        %v282 = vmul.f32 %v230, %v276
        %v283 = vmul.f32 %v230, %v280
        %v284 = vmul.f32 %v235, %v272
        %v285 = vmul.f32 %v235, %v276
        %v286 = vmul.f32 %v235, %v280
        %v287 = vmul.f32 %v240, %v272
        %v288 = vmul.f32 %v240, %v276
        %v289 = vmul.f32 %v240, %v280
        %v290 = vmul.f32 %v245, %v272
        %v291 = vmul.f32 %v245, %v276
        %v292 = vmul.f32 %v245, %v280
        %v293 = vmul.f32 %v250, %v272
        %v294 = vmul.f32 %v250, %v276
        %v295 = vmul.f32 %v250, %v280
        %296 = vset.pattern.permute.xlu0 1
        %297 = vperm.xlu0 %296, %v222
        %v298 = vpop.permute.xlu0 %297
        %300 = vset.pattern.permute.xlu0 1
        %301 = vperm.xlu0 %300, %v223
        %v302 = vpop.permute.xlu0 %301
        %304 = vset.pattern.permute.xlu0 1
        %305 = vperm.xlu0 %304, %v224
        %v306 = vpop.permute.xlu0 %305
        %308 = vset.pattern.permute.xlu0 1
        %309 = vperm.xlu0 %308, %v225
        %v310 = vpop.permute.xlu0 %309
        %312 = vset.pattern.permute.xlu0 1
        %313 = vperm.xlu0 %312, %v226
        %v314 = vpop.permute.xlu0 %313
        %v316 = vlaneseq
        %v317 = vshrl.u32 %v316, 7
        %v318 = vsub.s32 1, %v317
        %v319 = vrot.slane %v220, %v318
        %v320 = vlaneseq
        %v321 = vshrl.u32 %v320, 7
        %v322 = vsub.s32 5, %v321
        %v323 = vrot.slane %v220, %v322
        %v324 = vlaneseq
        %v325 = vshrl.u32 %v324, 7
        %v326 = vsub.s32 1, %v325
        %v327 = vrot.slane %v221, %v326
        %v331 = vlaneseq
        %v332 = vshrl.u32 %v331, 7
        %v333 = vsub.s32 1, %v332
        %v334 = vrot.slane %v319, %v333
        %v335 = vlaneseq
        %v336 = vshrl.u32 %v335, 7
        %v337 = vsub.s32 1, %v336
        %v338 = vrot.slane %v323, %v337
        %v339 = vlaneseq
        %v340 = vshrl.u32 %v339, 7
        %v341 = vsub.s32 1, %v340
        %v342 = vrot.slane %v327, %v341
        %v343 = vmul.f32 %v298, %v334
        %v344 = vmul.f32 %v298, %v338
        %v345 = vmul.f32 %v298, %v342
        %v346 = vmul.f32 %v302, %v334
        %v347 = vmul.f32 %v302, %v338
        %v348 = vmul.f32 %v302, %v342
        %v349 = vmul.f32 %v306, %v334
        %v350 = vmul.f32 %v306, %v338
        %v351 = vmul.f32 %v306, %v342
        %v352 = vmul.f32 %v310, %v334
        %v353 = vmul.f32 %v310, %v338
        %v354 = vmul.f32 %v310, %v342
        %v355 = vmul.f32 %v314, %v334
        %v356 = vmul.f32 %v314, %v338
        %v357 = vmul.f32 %v314, %v342
        %v358 = vadd.f32 %v281, %v343
        %v359 = vadd.f32 %v282, %v344
        %v360 = vadd.f32 %v283, %v345
        %v361 = vadd.f32 %v284, %v346
        %v362 = vadd.f32 %v285, %v347
        %v363 = vadd.f32 %v286, %v348
        %v364 = vadd.f32 %v287, %v349
        %v365 = vadd.f32 %v288, %v350
        %v366 = vadd.f32 %v289, %v351
        %v367 = vadd.f32 %v290, %v352
        %v368 = vadd.f32 %v291, %v353
        %v369 = vadd.f32 %v292, %v354
        %v370 = vadd.f32 %v293, %v355
        %v371 = vadd.f32 %v294, %v356
        %v372 = vadd.f32 %v295, %v357
        %373 = vset.pattern.permute.xlu0 2
        %374 = vperm.xlu0 %373, %v222
        %v375 = vpop.permute.xlu0 %374
        %377 = vset.pattern.permute.xlu0 2
        %378 = vperm.xlu0 %377, %v223
        %v379 = vpop.permute.xlu0 %378
        %381 = vset.pattern.permute.xlu0 2
        %382 = vperm.xlu0 %381, %v224
        %v383 = vpop.permute.xlu0 %382
        %385 = vset.pattern.permute.xlu0 2
        %386 = vperm.xlu0 %385, %v225
        %v387 = vpop.permute.xlu0 %386
        %389 = vset.pattern.permute.xlu0 2
        %390 = vperm.xlu0 %389, %v226
        %v391 = vpop.permute.xlu0 %390
        %v393 = vlaneseq
        %v394 = vshrl.u32 %v393, 7
        %v395 = vsub.s32 2, %v394
        %v396 = vrot.slane %v220, %v395
        %v397 = vlaneseq
        %v398 = vshrl.u32 %v397, 7
        %v399 = vsub.s32 6, %v398
        %v400 = vrot.slane %v220, %v399
        %v401 = vlaneseq
        %v402 = vshrl.u32 %v401, 7
        %v403 = vsub.s32 2, %v402
        %v404 = vrot.slane %v221, %v403
        %v408 = vlaneseq
        %v409 = vshrl.u32 %v408, 7
        %v410 = vsub.s32 2, %v409
        %v411 = vrot.slane %v396, %v410
        %v412 = vlaneseq
        %v413 = vshrl.u32 %v412, 7
        %v414 = vsub.s32 2, %v413
        %v415 = vrot.slane %v400, %v414
        %v416 = vlaneseq
        %v417 = vshrl.u32 %v416, 7
        %v418 = vsub.s32 2, %v417
        %v419 = vrot.slane %v404, %v418
        %v420 = vmul.f32 %v375, %v411
        %v421 = vmul.f32 %v375, %v415
        %v422 = vmul.f32 %v375, %v419
        %v423 = vmul.f32 %v379, %v411
        %v424 = vmul.f32 %v379, %v415
        %v425 = vmul.f32 %v379, %v419
        %v426 = vmul.f32 %v383, %v411
        %v427 = vmul.f32 %v383, %v415
        %v428 = vmul.f32 %v383, %v419
        %v429 = vmul.f32 %v387, %v411
        %v430 = vmul.f32 %v387, %v415
        %v431 = vmul.f32 %v387, %v419
        %v432 = vmul.f32 %v391, %v411
        %v433 = vmul.f32 %v391, %v415
        %v434 = vmul.f32 %v391, %v419
        %v435 = vadd.f32 %v358, %v420
        %v436 = vadd.f32 %v359, %v421
        %v437 = vadd.f32 %v360, %v422
        %v438 = vadd.f32 %v361, %v423
        %v439 = vadd.f32 %v362, %v424
        %v440 = vadd.f32 %v363, %v425
        %v441 = vadd.f32 %v364, %v426
        %v442 = vadd.f32 %v365, %v427
        %v443 = vadd.f32 %v366, %v428
        %v444 = vadd.f32 %v367, %v429
        %v445 = vadd.f32 %v368, %v430
        %v446 = vadd.f32 %v369, %v431
        %v447 = vadd.f32 %v370, %v432
        %v448 = vadd.f32 %v371, %v433
        %v449 = vadd.f32 %v372, %v434
        %450 = vset.pattern.permute.xlu0 3
        %451 = vperm.xlu0 %450, %v222
        %v452 = vpop.permute.xlu0 %451
        %454 = vset.pattern.permute.xlu0 3
        %455 = vperm.xlu0 %454, %v223
        %v456 = vpop.permute.xlu0 %455
        %458 = vset.pattern.permute.xlu0 3
        %459 = vperm.xlu0 %458, %v224
        %v460 = vpop.permute.xlu0 %459
        %462 = vset.pattern.permute.xlu0 3
        %463 = vperm.xlu0 %462, %v225
        %v464 = vpop.permute.xlu0 %463
        %466 = vset.pattern.permute.xlu0 3
        %467 = vperm.xlu0 %466, %v226
        %v468 = vpop.permute.xlu0 %467
        %v470 = vlaneseq
        %v471 = vshrl.u32 %v470, 7
        %v472 = vsub.s32 3, %v471
        %v473 = vrot.slane %v220, %v472
        %v474 = vlaneseq
        %v475 = vshrl.u32 %v474, 7
        %v476 = vsub.s32 7, %v475
        %v477 = vrot.slane %v220, %v476
        %v478 = vlaneseq
        %v479 = vshrl.u32 %v478, 7
        %v480 = vsub.s32 3, %v479
        %v481 = vrot.slane %v221, %v480
        %v485 = vlaneseq
        %v486 = vshrl.u32 %v485, 7
        %v487 = vsub.s32 3, %v486
        %v488 = vrot.slane %v473, %v487
        %v489 = vlaneseq
        %v490 = vshrl.u32 %v489, 7
        %v491 = vsub.s32 3, %v490
        %v492 = vrot.slane %v477, %v491
        %v493 = vlaneseq
        %v494 = vshrl.u32 %v493, 7
        %v495 = vsub.s32 3, %v494
        %v496 = vrot.slane %v481, %v495
        %v497 = vmul.f32 %v452, %v488
        %v498 = vmul.f32 %v452, %v492
        %v499 = vmul.f32 %v452, %v496
        %v500 = vmul.f32 %v456, %v488
        %v501 = vmul.f32 %v456, %v492
        %v502 = vmul.f32 %v456, %v496
        %v503 = vmul.f32 %v460, %v488
        %v504 = vmul.f32 %v460, %v492
        %v505 = vmul.f32 %v460, %v496
        %v506 = vmul.f32 %v464, %v488
        %v507 = vmul.f32 %v464, %v492
        %v508 = vmul.f32 %v464, %v496
        %v509 = vmul.f32 %v468, %v488
        %v510 = vmul.f32 %v468, %v492
        %v511 = vmul.f32 %v468, %v496
        %v512 = vadd.f32 %v435, %v497
        %v513 = vadd.f32 %v436, %v498
        %v514 = vadd.f32 %v437, %v499
        %v515 = vadd.f32 %v438, %v500
        %v516 = vadd.f32 %v439, %v501
        %v517 = vadd.f32 %v440, %v502
        %v518 = vadd.f32 %v441, %v503
        %v519 = vadd.f32 %v442, %v504
        %v520 = vadd.f32 %v443, %v505
        %v521 = vadd.f32 %v444, %v506
        %v522 = vadd.f32 %v445, %v507
        %v523 = vadd.f32 %v446, %v508
        %v524 = vadd.f32 %v447, %v509
        %v525 = vadd.f32 %v448, %v510
        %v526 = vadd.f32 %v449, %v511
        %v527 = vld [vmem:[%s219] sm:$0xf]
        %528 = vrot.lane.b32.xlu0 %v515, 1
        %v529 = vpop.permute.xlu0 %528
        %530 = vrot.lane.b32.xlu0 %v516, 1
        %v531 = vpop.permute.xlu0 %530
        %532 = vrot.lane.b32.xlu0 %v517, 1
        %v533 = vpop.permute.xlu0 %532
        %v534 = vlaneseq
        %v535 = vand.u32 %v534, 127
        %vm536 = vcmp.lt.s32.totalorder %v535, 1
        %v537 = vsel %vm536, %v531, %v533
        %v538 = vsel %vm536, %v529, %v531
        %v539 = vsel %vm536, %v533, %v529
        %v540 = vadd.f32 %v512, %v539
        %v541 = vadd.f32 %v513, %v538
        %v542 = vadd.f32 %v514, %v537
        %543 = vrot.lane.b32.xlu0 %v521, 17
        %v544 = vpop.permute.xlu0 %543
        %545 = vrot.lane.b32.xlu0 %v522, 17
        %v546 = vpop.permute.xlu0 %545
        %547 = vrot.lane.b32.xlu0 %v523, 17
        %v548 = vpop.permute.xlu0 %547
        %vm549 = vcmp.lt.s32.totalorder %v535, 17
        %v550 = vsel %vm549, %v546, %v548
        %v551 = vsel %vm549, %v544, %v546
        %v552 = vsel %vm549, %v548, %v544
        %v553 = vadd.f32 %v540, %v552
        %v554 = vadd.f32 %v541, %v551
        %v555 = vadd.f32 %v542, %v550
        %556 = vrot.lane.b32.xlu0 %v524, 18
        %v557 = vpop.permute.xlu0 %556
        %558 = vrot.lane.b32.xlu0 %v525, 18
        %v559 = vpop.permute.xlu0 %558
        %560 = vrot.lane.b32.xlu0 %v526, 18
        %v561 = vpop.permute.xlu0 %560
        %vm562 = vcmp.lt.s32.totalorder %v535, 18
        %v563 = vsel %vm562, %v559, %v561
        %v564 = vsel %vm562, %v557, %v559
        %v565 = vsel %vm562, %v561, %v557
        %v566 = vadd.f32 %v553, %v565
        %v567 = vadd.f32 %v554, %v564
        %v568 = vadd.f32 %v555, %v563
        %570 = vset.pattern.permute.xlu0 0
        %571 = vperm.xlu0 %570, %v527
        %v572 = vpop.permute.xlu0 %571
        %v574 = vadd.f32 %v566, %v572
        %v575 = vadd.f32 %v567, %v572
        %v576 = vadd.f32 %v568, %v572
        %v579 = vcombine.low %v574, %v575
        %581 = vst [vmem:[%s205] sm:$0xff] %v579
        %582 = vst [vmem:[%s205 + $0x8] sm:$0xf] %v576
        %v586 = vrot.slane %v521, 4
        %v587 = vrot.slane %v522, 4
        %v588 = vrot.slane %v523, 4
        %592 = vrot.lane.b32.xlu0 %v586, 17
        %v593 = vpop.permute.xlu0 %592
        %594 = vrot.lane.b32.xlu0 %v587, 17
        %v595 = vpop.permute.xlu0 %594
        %596 = vrot.lane.b32.xlu0 %v588, 17
        %v597 = vpop.permute.xlu0 %596
        %v598 = vsel %vm549, %v595, %v597
        %v599 = vsel %vm549, %v593, %v595
        %v600 = vsel %vm549, %v597, %v593
        %v604 = vrot.slane %v600, 4
        %v605 = vrot.slane %v599, 4
        %v606 = vrot.slane %v598, 4
        %v610 = vadd.f32 %v512, %v604
        %v611 = vadd.f32 %v513, %v605
        %v612 = vadd.f32 %v514, %v606
        %v613 = vrot.slane %v572, 4
        %v615 = vadd.f32 %v610, %v613
        %v616 = vadd.f32 %v611, %v613
        %v617 = vadd.f32 %v612, %v613
        %v621 = vcombine.high %v615, %v616
        %v622 = vcombine.high %v617, %v617
        %s625 = scalar_lea.vmem %s205, 12 [#allocation2]
        %626 = vst [vmem:[%s625] sm:$0xff] %v621
        %627 = vst [vmem:[%s625 + $0x8] sm:$0xf] %v622
        %v631 = vrot.slane %v518, 4
        %v632 = vrot.slane %v519, 4
        %v633 = vrot.slane %v520, 4
        %637 = vrot.lane.b32.xlu0 %v631, 1
        %v638 = vpop.permute.xlu0 %637
        %639 = vrot.lane.b32.xlu0 %v632, 1
        %v640 = vpop.permute.xlu0 %639
        %641 = vrot.lane.b32.xlu0 %v633, 1
        %v642 = vpop.permute.xlu0 %641
        %v643 = vsel %vm536, %v640, %v642
        %v644 = vsel %vm536, %v638, %v640
        %v645 = vsel %vm536, %v642, %v638
        %v649 = vrot.slane %v645, 4
        %v650 = vrot.slane %v644, 4
        %v651 = vrot.slane %v643, 4
        %v655 = vadd.f32 %v515, %v649
        %v656 = vadd.f32 %v516, %v650
        %v657 = vadd.f32 %v517, %v651
        %v658 = vadd.f32 %v655, %v613
        %v659 = vadd.f32 %v656, %v613
        %v660 = vadd.f32 %v657, %v613
        %v664 = vcombine.high %v658, %v659
        %v665 = vcombine.high %v660, %v660
        %s668 = scalar_lea.vmem %s205, 24 [#allocation2]
        %669 = vst [vmem:[%s668] sm:$0xff] %v664
        %670 = vst [vmem:[%s668 + $0x8] sm:$0xf] %v665
        %v671 = vadd.f32 %v518, %v572
        %v672 = vadd.f32 %v519, %v572
        %v673 = vadd.f32 %v520, %v572
        %v676 = vcombine.low %v671, %v672
        %s678 = scalar_lea.vmem %s205, 36 [#allocation2]
        %679 = vst [vmem:[%s678] sm:$0xff] %v676
        %680 = vst [vmem:[%s678 + $0x8] sm:$0xf] %v673
        %s681 = sand.u32 %s117, 1
        %s682 = scalar_lea.sflag [#allocation3], %s681
        %s683 = sand.u32 %s117, 1
        %s684 = smul.addr %s683, 48
        %s685 = scalar_lea.vmem [#allocation2], %s684
        // Predicated region
        $region33: #{tpu_custom_call.1} parent=31 // pred_check
          %p686 = pneg %p127
        $region34: #{tpu_custom_call.1} parent=31 // pred_check_branch
          %688 = sbr.rel (%p686) target = $region36
        $region35: #{tpu_custom_call.1} parent=31 // pred_region
          %s690 = ssub.s32 768, 768
          %691 = vsyncadd %s682, %s690
          %s692 = smul.addr %s22, 12
          %s693 = smul.addr %s21, 12
          %s694 = sadd.s32 %s692, %s693
          %s695 = smul.addr %s694, 64
          %s696 = scalar_lea.hbm %s3, %s695
          %s697 = sshll.u32 %s685, 4
          %s698 = int_to_ptr.vmem [resolvable:$true] %s697
          %703 = dma.vmem_to_hbm [thread:$0]  %s698, 768, %s696, %s682, 192, 192, 12
        $region36: #{tpu_custom_call.1} parent=31 // pred_fallthru
          _
      $region32: #{tpu_custom_call.1} parent=5 // pred_fallthru
        _
      %p704 = scmp.le.s32.totalorder 2, %s12
      // Predicated region
      $region37: #{tpu_custom_call.1} parent=5 // pred_check
        %p705 = pneg %p704
      $region38: #{tpu_custom_call.1} parent=5 // pred_check_branch
        %707 = sbr.rel (%p705) target = $region40
      $region39: #{tpu_custom_call.1} parent=5 // pred_region
        %s708 = ssub.s32 %s12, 2
        // Predicated region
        $region41: #{tpu_custom_call.1} parent=39 // pred_check
          %p709 = pneg %p133
        $region42: #{tpu_custom_call.1} parent=39 // pred_check_branch
          %711 = sbr.rel (%p709) target = $region44
        $region43: #{tpu_custom_call.1} parent=39 // pred_region
          %s712 = sand.u32 %s118, 1
          %s713 = scalar_lea.sflag [#allocation3], %s712
          %s714 = sand.u32 %s118, 1
          %s715 = smul.addr %s714, 48
          %s716 = scalar_lea.vmem [#allocation2], %s715
          %717 = dma.done %s713, 768
        $region44: #{tpu_custom_call.1} parent=39 // pred_fallthru
          _
      $region40: #{tpu_custom_call.1} parent=5 // pred_fallthru
        _
    $region6: #{tpu_custom_call.1} parent=1 // loop_footer
      %s16 = sadd.s32 1, %s12
    $region7: #{tpu_custom_call.1} parent=1 // loop_footer_branch
      %11 = sbr.rel target = $region3
    $region8: #{tpu_custom_call.1} parent=1 // loop_exit
      _
    %718 = vsyncpa [#allocation3], 1
    %s719 = scalar_lea.sflag [#allocation3], 1
    %720 = vsyncpa %s719, 1

</llo_original>
